<compile_context>
chip_gen: v6e
topology: v6e:2x2x1
jax: 0.10.0
libtpu: 0.0.40
codegen_flags: <defaults>
</compile_context>

<pallas_src>
import math

import jax
import jax.numpy as jnp
from jax.experimental import pallas as pl
from jax.experimental.pallas import tpu as pltpu


# ----------------------------------------------------------------------------
# Kernels
# ----------------------------------------------------------------------------
def _replicate_kernel(x_ref, o_ref):
    # Grid step (r, i): copy row-tile r of x into replica i of the output.
    # The output BlockSpec squeezes the replica axis, so shapes match exactly.
    o_ref[...] = x_ref[...]


def _weighted_sum_kernel(w_ref, g_ref, o_ref, acc_ref):
    # Grid step (r, i): acc += g[i, tile_r] * w[i]; write out on the last i.
    i = pl.program_id(1)

    @pl.when(i == 0)
    def _():
        acc_ref[...] = jnp.zeros_like(acc_ref)

    acc_ref[...] += g_ref[...].astype(jnp.float32) * w_ref[i]

    @pl.when(i == pl.num_programs(1) - 1)
    def _():
        o_ref[...] = acc_ref[...].astype(o_ref.dtype)


# ----------------------------------------------------------------------------
# Layout / tiling helpers
# ----------------------------------------------------------------------------
def _gen_params():
    """(target_tile_bytes, vmem_limit_bytes) chosen per TPU generation."""
    vmem_phys = 128 * 1024 * 1024
    try:
        info = pltpu.get_tpu_info()
        vmem_phys = int(getattr(info, "vmem_capacity_bytes", vmem_phys))
    except Exception:
        pass
    if vmem_phys <= 64 * 1024 * 1024:
        # v7x-class: 64 MiB physical VMEM, fastest HBM -> bigger-but-bounded.
        return 6 * 1024 * 1024, 48 * 1024 * 1024
    # v5e / v6e: 128 MiB physical VMEM.
    return 10 * 1024 * 1024, 64 * 1024 * 1024


def _lane_dense_layout(total_elems: int):
    """Pick a lane-dense (rows, cols, padded_total) 2-D layout.

    cols is always a multiple of 128 -> unmasked vector stores / dense DMAs.
    If the element count is not a multiple of 128, pad up to a multiple of
    1024 (8 sublanes x 128 lanes); caller slices the pad tail off afterwards.
    """
    if total_elems % 128 == 0:
        for cols in (512, 1024, 2048, 256, 128):
            if total_elems % cols == 0:
                return total_elems // cols, cols, total_elems
    padded = ((total_elems + 1023) // 1024) * 1024
    return padded // 1024, 1024, padded


def _row_tile(rows: int, cols: int, itemsize: int, target_bytes: int,
              min_tiles: int = 2) -> int:
    """Row-tile size: sublane-packing multiple, ~target_bytes per block,
    preferring at least `min_tiles` tiles so megacore (v7x) has work to shard."""
    sub = 8 * max(1, 4 // max(1, itemsize))  # 8 (f32) / 16 (bf16) / 32 (int8)
    if rows <= sub:
        return rows  # block dim == full array dim (always legal)
    tr = max(1, target_bytes // (cols * itemsize))
    tr = min(tr, rows)
    tr = max(sub, (tr // sub) * sub)
    if min_tiles > 1 and (rows + tr - 1) // tr < min_tiles and rows >= min_tiles * sub:
        tr_alt = (((rows + min_tiles - 1) // min_tiles) // sub) * sub
        tr = max(sub, min(tr, tr_alt))
    return tr


# ----------------------------------------------------------------------------
# Forward: replicate x K times along a new leading axis
# ----------------------------------------------------------------------------
def _replicate_forward(x: jax.Array, k: int) -> jax.Array:
    orig_shape = x.shape
    total = math.prod(orig_shape) if orig_shape else 1
    if total == 0:
        # Zero-sized tensor: nothing to DMA; avoid a zero-dim grid.
        return jnp.broadcast_to(jnp.reshape(x, (1,) + orig_shape), (k,) + orig_shape)

    itemsize = jnp.dtype(x.dtype).itemsize
    rows, cols, padded = _lane_dense_layout(total)

    xf = x.reshape(-1)
    if padded != total:
        xf = jnp.pad(xf, (0, padded - total))
    x2d = xf.reshape(rows, cols)

    target_tile_bytes, vmem_limit = _gen_params()
    tr = _row_tile(rows, cols, itemsize, target_tile_bytes)
    num_row_tiles = pl.cdiv(rows, tr)
    bytes_accessed = (k + 1) * padded * itemsize

    # Row tiles outermost, replica index innermost: the input block index is
    # constant across k, so Pallas fetches each x tile from HBM only once while
    # writing it K times. If there is only one row tile, shard K across cores.
    dims = ("parallel", "arbitrary")
    if num_row_tiles == 1 and k > 1:
        dims = ("arbitrary", "parallel")

    out2d = pl.pallas_call(
        _replicate_kernel,
        out_shape=jax.ShapeDtypeStruct((k, rows, cols), x.dtype),
        grid=(num_row_tiles, k),
        in_specs=[pl.BlockSpec((tr, cols), lambda r, i: (r, 0))],
        # Leading None squeezes the replica axis: kernel sees (tr, cols) refs.
        out_specs=pl.BlockSpec((None, tr, cols), lambda r, i: (i, r, 0)),
        compiler_params=pltpu.CompilerParams(
            dimension_semantics=dims,
            vmem_limit_bytes=vmem_limit,
        ),
        cost_estimate=pl.CostEstimate(
            flops=0, transcendentals=0, bytes_accessed=bytes_accessed
        ),
    )(x2d)

    out = out2d.reshape(k, padded)
    if padded != total:
        out = out[:, :total]
    return out.reshape((k,) + orig_shape)


# ----------------------------------------------------------------------------
# Backward: grad_x = sum_i grad_out[i] * weight[i]  (Pallas reduction)
# ----------------------------------------------------------------------------
def _weighted_sum_backward(g: jax.Array, weights: jax.Array) -> jax.Array:
    k = int(weights.shape[0])
    x_shape = g.shape[1:]
    x_dtype = g.dtype
    total = math.prod(x_shape) if x_shape else 1
    if total == 0:
        return jnp.zeros(x_shape, x_dtype)

    itemsize = jnp.dtype(x_dtype).itemsize
    rows, cols, padded = _lane_dense_layout(total)

    gf = g.reshape(k, total)
    if padded != total:
        gf = jnp.pad(gf, ((0, 0), (0, padded - total)))
    g3d = gf.reshape(k, rows, cols)

    target_tile_bytes, vmem_limit = _gen_params()
    tr = _row_tile(rows, cols, itemsize, target_tile_bytes)
    num_row_tiles = pl.cdiv(rows, tr)
    bytes_accessed = (k + 1) * padded * itemsize

    out2d = pl.pallas_call(
        _weighted_sum_kernel,
        out_shape=jax.ShapeDtypeStruct((rows, cols), x_dtype),
        grid_spec=pltpu.PrefetchScalarGridSpec(
            num_scalar_prefetch=1,  # weights -> SMEM, read per grid step
            grid=(num_row_tiles, k),
            in_specs=[pl.BlockSpec((None, tr, cols), lambda r, i, w: (i, r, 0))],
            out_specs=pl.BlockSpec((tr, cols), lambda r, i, w: (r, 0)),
            scratch_shapes=[pltpu.VMEM((tr, cols), jnp.float32)],
        ),
        compiler_params=pltpu.CompilerParams(
            dimension_semantics=("parallel", "arbitrary"),
            vmem_limit_bytes=vmem_limit,
        ),
        cost_estimate=pl.CostEstimate(
            flops=2 * k * padded, transcendentals=0, bytes_accessed=bytes_accessed
        ),
    )(weights.astype(jnp.float32), g3d)

    out = out2d.reshape(padded)
    if padded != total:
        out = out[:total]
    return out.reshape(x_shape)


# ----------------------------------------------------------------------------
# custom_vjp wiring (the functional core of Grad_Balancer)
# ----------------------------------------------------------------------------
@jax.custom_vjp
def grad_balancer_apply(x: jax.Array, weights: jax.Array) -> jax.Array:
    return _replicate_forward(x, int(weights.shape[0]))


def _gb_fwd(x, weights):
    return _replicate_forward(x, int(weights.shape[0])), weights


def _gb_bwd(weights, g):
    gx = _weighted_sum_backward(g, weights)
    return gx, jnp.zeros_like(weights)


grad_balancer_apply.defvjp(_gb_fwd, _gb_bwd)


class GradBalancer:
    """JAX mirror of the PyTorch Grad_Balancer wrapper."""

    def __init__(self, weight_tensor_for_grad=None):
        if weight_tensor_for_grad is None:
            weight_tensor_for_grad = jnp.array([1.0, 1.0], dtype=jnp.float32)
        if weight_tensor_for_grad.ndim != 1:
            raise Exception("Param:weight_tensor_for_grad should be a vector.")
        # Positivity check done once here (not per forward call): avoids a
        # host sync in the hot path. Silently skipped for traced weights.
        try:
            w_host = jax.device_get(weight_tensor_for_grad)
        except Exception:
            w_host = None
        if w_host is not None:
            for i in range(w_host.shape[0]):
                if w_host[i] <= 0.0:
                    raise Exception(
                        f"The [{i}] element in the factor tensor is <=0.. It must be >0.."
                    )
        self.weight_tensor_for_grad = weight_tensor_for_grad
        # TODO(synk): PyTorch's `self.training and not x.requires_grad` guard has
        # no JAX equivalent (no requires_grad concept); omitted.

    def __call__(self, x):
        return grad_balancer_apply(x, self.weight_tensor_for_grad)


if __name__ == "__main__":
    key = jax.random.PRNGKey(0)
    # Small NCHW-style input.
    x = jax.random.normal(key, (2, 4, 16, 16), dtype=jnp.float32)

    # Deterministic positive grad-balancing weights (K=3 -> 3 replicas).
    weights = jnp.array([1.0, 0.5, 2.0], dtype=jnp.float32)

    module = GradBalancer(weights)
    out = jax.block_until_ready(module(x))

    expected = jnp.broadcast_to(x[None], (3,) + x.shape)
    assert out.shape == (3, 2, 4, 16, 16), out.shape
    assert out.dtype == x.dtype
    assert bool(jnp.allclose(out, expected)), "replication mismatch"

    # Backward: grad_x must be the weighted sum of the replica cotangents.
    g = jax.random.normal(jax.random.PRNGKey(2), out.shape, dtype=jnp.float32)
    _, vjp_fn = jax.vjp(lambda xx: grad_balancer_apply(xx, weights), x)
    (gx,) = vjp_fn(g)
    gx = jax.block_until_ready(gx)
    exp_gx = jnp.einsum("k,k...->...", weights, g)
    assert gx.shape == x.shape
    assert bool(jnp.allclose(gx, exp_gx, atol=1e-5, rtol=1e-5)), "vjp mismatch"

    # Padded lane-dense path (element count not a multiple of 128).
    x_odd = jax.random.normal(jax.random.PRNGKey(1), (2, 3, 7), dtype=jnp.float32)
    out_odd = jax.block_until_ready(module(x_odd))
    exp_odd = jnp.broadcast_to(x_odd[None], (3, 2, 3, 7))
    assert out_odd.shape == (3, 2, 3, 7), out_odd.shape
    assert bool(jnp.allclose(out_odd, exp_odd)), "padded-path replication mismatch"

    print("KERNEL_OK")
</pallas_src>

<mosaic_0001>
module attributes {stable_mosaic.version = 11 : i64} {
  func.func @_replicate_kernel(%arg0: i32, %arg1: i32, %arg2: memref<4x512xf32, #tpu.memory_space<vmem>>, %arg3: memref<1x4x512xf32, #tpu.memory_space<vmem>>) attributes {dimension_semantics = [#tpu.dimension_semantics<arbitrary>, #tpu.dimension_semantics<parallel>], iteration_bounds = array<i64: 1, 3>, scalar_prefetch = 0 : i64, scratch_operands = 0 : i64, tpu.core_type = #tpu.core_type<tc>, window_params = [{transform_indices = @transform_0, window_bounds = array<i64: 4, 512>}, {transform_indices = @transform_1, window_bounds = array<i64: 1, 4, 512>}]} {
    %c0 = arith.constant 0 : index
    %c0_0 = arith.constant 0 : index
    %0 = vector.load %arg2[%c0, %c0_0] : memref<4x512xf32, #tpu.memory_space<vmem>>, vector<4x512xf32>
    %c0_1 = arith.constant 0 : index
    %c0_2 = arith.constant 0 : index
    %c0_3 = arith.constant 0 : index
    %1 = vector.load %arg3[%c0_1, %c0_2, %c0_3] : memref<1x4x512xf32, #tpu.memory_space<vmem>>, vector<1x4x512xf32>
    %2 = vector.shape_cast %1 : vector<1x4x512xf32> to vector<4x512xf32>
    %3 = vector.shape_cast %0 : vector<4x512xf32> to vector<1x4x512xf32>
    tpu.vector_store %arg3[%c0_1, %c0_2, %c0_3], %3 {strides = array<i32>} : memref<1x4x512xf32, #tpu.memory_space<vmem>>, vector<1x4x512xf32>,
    return
  }
  func.func @transform_0(%arg0: i32, %arg1: i32) -> (i32, i32) {
    %c0_i32 = arith.constant 0 : i32
    %c0_i32_0 = arith.constant 0 : i32
    return %arg0, %c0_i32 : i32, i32
  }
  func.func @transform_1(%arg0: i32, %arg1: i32) -> (i32, i32, i32) {
    %c0_i32 = arith.constant 0 : i32
    %c0_i32_0 = arith.constant 0 : i32
    return %arg1, %arg0, %c0_i32 : i32, i32, i32
  }
}

</mosaic_0001>

<llo_original>
// kernel: tpu_custom_call.1
$region0: #{tpu_custom_call.1}
  #allocation0 [shape = 'u32[]', space=smem, size = 0x4, offset = 0x4, fixed_abs, tag = 'smem constant byte address 0x4 - core index']
  #allocation1 [shape = 'u32[144,128]{1,0:T(1,128)}', space=vmem, size = 0x12000, scoped, tag = 'internal scratch']
  %s0 = inlined_call_operand.hbm [shape: f32[4,512], index: 0, kind: input, shape index: {}]
  %s1 = inlined_call_operand.hbm [shape: f32[3,4,512], index: 1, kind: output, shape index: {}]
  %s2 = sld [smem:[#allocation0]]
  $region41: #{tpu_custom_call.1} parent=0
    _
  %s4 = ssub.s32 1, %s2
  %s5 = scalar_select 0, %s4, %s2
  $region1: #{tpu_custom_call.1} parent=0
    #allocation2 [shape = 'u8[8192]{0}', space=vmem, size = 0x2000, scoped, tag = 'input window, operand 0, single buffered']
    #allocation3 [shape = 's32[2]{0}', space=sflag, size = 0x8, scoped, tag = 'scoped memory for tpu_custom_call.1']
    #allocation4 [shape = 's32[2]{0}', space=sflag, size = 0x8, scoped, tag = 'scoped memory for tpu_custom_call.1']
    #allocation5 [shape = 'u8[16384]{0}', space=vmem, size = 0x4000, scoped, tag = 'output window, operand 0']
    %6 = vsyncpa [#allocation3], 0
    %7 = vsyncpa [#allocation4], 0
    %s8 = scalar_lea.sflag [#allocation4], 1
    %9 = vsyncpa %s8, 0
    loop: start=0, step=1, limit=5
    $region2: #{tpu_custom_call.1} parent=1 // loop_pre_header
      _
    $region3: #{tpu_custom_call.1} parent=1 // loop_header
      %s11 = sphi 0, %s15
      %p12 = scmp.ge.s32.totalorder %s11, 5
      %s18 = sphi 0, %s30
      %s19 = sphi 0, %s26
      %s20 = sphi 0, %s18
      %s21 = sphi 0, %s19
      %s22 = sphi 0, %s20
      %s23 = sphi 0, %s21
      %s33 = sphi 0, %s35
      %s36 = sphi 0, %s33
      %s37 = sphi 0, %s36
      %s53 = sphi 0, %s37
      %s61 = sphi 0, %s63
      %s64 = sphi 0, %s61
      %s65 = sphi 0, %s64
      %s81 = sphi 0, %s65
    $region4: #{tpu_custom_call.1} parent=1 // loop_header_branch
      %14 = sbr.rel (%p12) target = $region8
    $region5: #{tpu_custom_call.1} parent=1 // loop_body
      %s16 = ssub.s32 %s11, 1
      %s17 = ssub.s32 %s11, 2
      %s24 = sadd.s32 1, %s19
      %p25 = scmp.ge.s32.totalorder %s24, 3
      %s26 = scalar_select %p25, 0, %s24
      %s27 = sadd.s32 1, %s18
      %s28 = scalar_select %p25, %s27, %s18
      %p29 = scmp.ge.s32.totalorder %s28, 1
      %s30 = scalar_select %p29, 0, %s28
      %s31 = ssub.s32 %s18, %s30
      %p32 = scmp.eq.s32.totalorder %s31, 0
      %s34 = sadd.s32 %s33, 1
      %s35 = scalar_select %p32, %s33, %s34
      %p38 = pneg %p32
      %p39 = scmp.eq.s32.totalorder %s11, 2
      %p40 = por %p38, %p39
      %p41 = scmp.ne.s32.totalorder %s33, %s36
      %p42 = scmp.eq.s32.totalorder %s11, 0
      %p43 = por %p41, %p42
      %p44 = scmp.ne.s32.totalorder %s33, %s36
      %p45 = scmp.eq.s32.totalorder %s16, 2
      %p46 = por %p44, %p45
      %p47 = scmp.ne.s32.totalorder %s36, %s37
      %p48 = scmp.eq.s32.totalorder %s16, 0
      %p49 = por %p47, %p48
      %p50 = scmp.ne.s32.totalorder %s36, %s37
      %p51 = scmp.eq.s32.totalorder %s17, 2
      %p52 = por %p50, %p51
      %p54 = scmp.ne.s32.totalorder %s37, %s53
      %p55 = scmp.eq.s32.totalorder %s17, 0
      %p56 = por %p54, %p55
      %s57 = ssub.s32 %s19, %s26
      %s58 = ssub.s32 %s18, %s30
      %s59 = sor.u32 %s57, %s58
      %p60 = scmp.eq.s32.totalorder %s59, 0
      %s62 = sadd.s32 %s61, 1
      %s63 = scalar_select %p60, %s61, %s62
      %p66 = pneg %p60
      %p67 = scmp.eq.s32.totalorder %s11, 2
      %p68 = por %p66, %p67
      %p69 = scmp.ne.s32.totalorder %s61, %s64
      %p70 = scmp.eq.s32.totalorder %s11, 0
      %p71 = por %p69, %p70
      %p72 = scmp.ne.s32.totalorder %s61, %s64
      %p73 = scmp.eq.s32.totalorder %s16, 2
      %p74 = por %p72, %p73
      %p75 = scmp.ne.s32.totalorder %s64, %s65
      %p76 = scmp.eq.s32.totalorder %s16, 0
      %p77 = por %p75, %p76
      %p78 = scmp.ne.s32.totalorder %s64, %s65
      %p79 = scmp.eq.s32.totalorder %s17, 2
      %p80 = por %p78, %p79
      %p82 = scmp.ne.s32.totalorder %s65, %s81
      %p83 = scmp.eq.s32.totalorder %s17, 0
      %p84 = por %p82, %p83
      %p85 = scmp.le.s32.totalorder 1, %s11
      %p86 = scmp.lt.s32.totalorder %s11, 4
      %p87 = pnand %p85, %p86
      %p88 = pneg %p87
      // Predicated region
      $region9: #{tpu_custom_call.1} parent=5 // pred_check
        _
      $region10: #{tpu_custom_call.1} parent=5 // pred_check_branch
        %90 = sbr.rel (%p87) target = $region12
      $region11: #{tpu_custom_call.1} parent=5 // pred_region
        %s91 = ssub.s32 %s11, 1
        // Predicated region
        $region13: #{tpu_custom_call.1} parent=11 // pred_check
          %p92 = pneg %p49
        $region14: #{tpu_custom_call.1} parent=11 // pred_check_branch
          %94 = sbr.rel (%p92) target = $region16
        $region15: #{tpu_custom_call.1} parent=11 // pred_region
          %s96 = ssub.s32 256, 256
          %97 = vsyncadd [#allocation3], %s96
          %s98 = smul.addr %s20, 4
          %s99 = smul.addr %s98, 64
          %s100 = scalar_lea.hbm %s0, %s99
          %s102 = sshll.u32 [#allocation2], 4
          %s103 = int_to_ptr.vmem [resolvable:$true] %s102
          %105 = dma.hbm_to_vmem [thread:$0]  %s100, 256, %s103, [#allocation3]
        $region16: #{tpu_custom_call.1} parent=11 // pred_fallthru
          _
      $region12: #{tpu_custom_call.1} parent=5 // pred_fallthru
        _
      %p106 = scmp.lt.s32.totalorder %s11, 3
      // Predicated region
      $region17: #{tpu_custom_call.1} parent=5 // pred_check
        %p107 = pneg %p106
      $region18: #{tpu_custom_call.1} parent=5 // pred_check_branch
        %109 = sbr.rel (%p107) target = $region20
      $region19: #{tpu_custom_call.1} parent=5 // pred_region
        _
      $region20: #{tpu_custom_call.1} parent=5 // pred_fallthru
        _
      %p110 = scmp.le.s32.totalorder 1, %s11
      %p111 = scmp.lt.s32.totalorder %s11, 4
      %p112 = pnand %p110, %p111
      %p113 = pneg %p112
      // Predicated region
      $region21: #{tpu_custom_call.1} parent=5 // pred_check
        _
      $region22: #{tpu_custom_call.1} parent=5 // pred_check_branch
        %115 = sbr.rel (%p112) target = $region24
      $region23: #{tpu_custom_call.1} parent=5 // pred_region
        %s116 = ssub.s32 %s11, 1
        // Predicated region
        $region25: #{tpu_custom_call.1} parent=23 // pred_check
          %p117 = pneg %p49
        $region26: #{tpu_custom_call.1} parent=23 // pred_check_branch
          %119 = sbr.rel (%p117) target = $region28
        $region27: #{tpu_custom_call.1} parent=23 // pred_region
          %120 = dma.done [#allocation3], 256
        $region28: #{tpu_custom_call.1} parent=23 // pred_fallthru
          _
        %p121 = pneg %p49
        %p122 = pneg %p46
        %p123 = pneg %p77
        %p124 = pneg %p74
        %s125 = sand.u32 %s64, 1
        %s126 = scalar_lea.sflag [#allocation4], %s125
        %s127 = sand.u32 %s64, 1
        %s128 = smul.addr %s127, 16
        %s129 = scalar_lea.vmem [#allocation5], %s128
        %v130 = vld [vmem:[#allocation2] sm:$0xff]
        %v131 = vld [vmem:[#allocation2 + $0x8] sm:$0xff]
        %132 = vst [vmem:[%s129] sm:$0xff] %v130
        %133 = vst [vmem:[%s129 + $0x8] sm:$0xff] %v131
        %s134 = sand.u32 %s64, 1
        %s135 = scalar_lea.sflag [#allocation4], %s134
        %s136 = sand.u32 %s64, 1
        %s137 = smul.addr %s136, 16
        %s138 = scalar_lea.vmem [#allocation5], %s137
        // Predicated region
        $region29: #{tpu_custom_call.1} parent=23 // pred_check
          %p139 = pneg %p74
        $region30: #{tpu_custom_call.1} parent=23 // pred_check_branch
          %141 = sbr.rel (%p139) target = $region32
        $region31: #{tpu_custom_call.1} parent=23 // pred_region
          %s143 = ssub.s32 256, 256
          %144 = vsyncadd %s135, %s143
          %s145 = smul.addr %s20, 4
          %s146 = smul.addr %s21, 4
          %s147 = sadd.s32 %s145, %s146
          %s148 = smul.addr %s147, 64
          %s149 = scalar_lea.hbm %s1, %s148
          %s151 = sshll.u32 %s138, 4
          %s152 = int_to_ptr.vmem [resolvable:$true] %s151
          %154 = dma.vmem_to_hbm [thread:$0]  %s152, 256, %s149, %s135
        $region32: #{tpu_custom_call.1} parent=23 // pred_fallthru
          _
      $region24: #{tpu_custom_call.1} parent=5 // pred_fallthru
        _
      %p155 = scmp.le.s32.totalorder 2, %s11
      // Predicated region
      $region33: #{tpu_custom_call.1} parent=5 // pred_check
        %p156 = pneg %p155
      $region34: #{tpu_custom_call.1} parent=5 // pred_check_branch
        %158 = sbr.rel (%p156) target = $region36
      $region35: #{tpu_custom_call.1} parent=5 // pred_region
        %s159 = ssub.s32 %s11, 2
        // Predicated region
        $region37: #{tpu_custom_call.1} parent=35 // pred_check
          %p160 = pneg %p80
        $region38: #{tpu_custom_call.1} parent=35 // pred_check_branch
          %162 = sbr.rel (%p160) target = $region40
        $region39: #{tpu_custom_call.1} parent=35 // pred_region
          %s163 = sand.u32 %s65, 1
          %s164 = scalar_lea.sflag [#allocation4], %s163
          %s165 = sand.u32 %s65, 1
          %s166 = smul.addr %s165, 16
          %s167 = scalar_lea.vmem [#allocation5], %s166
          %168 = dma.done %s164, 256
        $region40: #{tpu_custom_call.1} parent=35 // pred_fallthru
          _
      $region36: #{tpu_custom_call.1} parent=5 // pred_fallthru
        _
    $region6: #{tpu_custom_call.1} parent=1 // loop_footer
      %s15 = sadd.s32 1, %s11
    $region7: #{tpu_custom_call.1} parent=1 // loop_footer_branch
      %10 = sbr.rel target = $region3
    $region8: #{tpu_custom_call.1} parent=1 // loop_exit
      _
    %169 = vsyncpa [#allocation3], 1
    %s170 = scalar_lea.sflag [#allocation3], 1
    %171 = vsyncpa %s170, 1
    %172 = vsyncpa [#allocation4], 1
    %s173 = scalar_lea.sflag [#allocation4], 1
    %174 = vsyncpa %s173, 1

</llo_original>
